<compile_context>
chip_gen: v5e
topology: v5e:2x2
jax: 0.10.0
libtpu: 0.0.40
codegen_flags: <defaults>
</compile_context>

<pallas_src>
import jax
import jax.numpy as jnp
from jax import lax
from jax.experimental import pallas as pl
from jax.experimental.pallas import tpu as pltpu

SELU_ALPHA = 1.6732632423543772
SELU_SCALE = 1.0507009873554805


def _selu(x):
    # Clamp before exp so the dead where-branch never produces inf.
    neg = SELU_ALPHA * (jnp.exp(jnp.minimum(x, 0.0)) - 1.0)
    return SELU_SCALE * jnp.where(x > 0, x, neg)


def _fwd_kernel(
    x_ref,                 # (TB, ext_size) f32 -- natural HBM layout
    w1_ref, b1_ref,        # (10, ext_size), (10, 1)
    w2_ref, b2_ref,        # (10, 10),       (10, 1)
    w3_ref, b3_ref,        # (20, 10),       (20, 1)
    wfc_ref, bfc_ref,      # (C, 20),        (C, 1)
    out_ref,               # (TB, C) f32 -- natural output layout
):
    # Layer 1 contracts both operands on their ext_size axis (MXU-native
    # "A @ B^T" flavor), so the feature-major flip costs no wrapper pass and
    # no explicit transpose: result is lane-dense (10, TB), batch on lanes.
    h = lax.dot_general(
        w1_ref[...], x_ref[...],
        dimension_numbers=(((1,), (1,)), ((), ())),
        preferred_element_type=jnp.float32) + b1_ref[...]
    h = _selu(h)
    h = jnp.dot(w2_ref[...], h, preferred_element_type=jnp.float32) + b2_ref[...]
    h = _selu(h)
    h = jnp.dot(w3_ref[...], h, preferred_element_type=jnp.float32) + b3_ref[...]
    h = _selu(h)
    # TODO(synk): nn.Dropout(0.8) is identity in eval mode; a training-mode
    # kernel would draw the mask via pltpu.prng_seed / pltpu.prng_random_bits.
    h = jnp.maximum(h, 0.0)                               # F.relu in forward()

    # Final layer stays feature-major on the MXU; one small (C, TB) -> (TB, C)
    # transpose on the otherwise-idle XLU/MXU yields the batch-major output so
    # the wrapper needs no output transpose (that was a full extra HBM pass).
    out_cm = jnp.dot(wfc_ref[...], h,
                     preferred_element_type=jnp.float32) + bfc_ref[...]
    out_ref[...] = out_cm.T.astype(out_ref.dtype)


def _round_up(n, m):
    return ((n + m - 1) // m) * m


def _target_rows_per_step():
    """Generation-aware rows-per-grid-step target.

    ~0.35us fixed cost per step => want >= ~0.3 MB/step on v5e (~0.8 TB/s),
    ~0.5-0.9 MB on v6e (~1.4 TB/s), >= ~1 MB on v7x (~3.2 TB/s).
    """
    try:
        kind = jax.devices()[0].device_kind.lower()
    except Exception:
        return 4096
    if "7" in kind:
        return 8192
    if "v5" in kind or "v4" in kind or "v3" in kind or "v2" in kind:
        return 2048
    return 4096  # v6e / unknown


def _choose_batch_tile(b, ext_size):
    """Pick (tile_rows, padded_batch): 128-aligned, pipeline/megacore friendly."""
    b_pad = _round_up(b, 128)                 # pad to lane width, not 1024
    # Keep the double-buffered x tile <= ~2 MiB/buffer so even v5e's 16 MiB
    # scoped-VMEM default holds comfortably once the padded output is added.
    vmem_cap = max(128, ((2 * 1024 * 1024) // (ext_size * 4)) // 128 * 128)
    tb = min(_target_rows_per_step(), vmem_cap, b_pad)
    # Grid-count floor: >= 4 steps (pipeline depth + balanced dual-TC split on
    # v7x) while each step still moves >= 2048 rows; >= 2 steps at >= 1024
    # rows; tiny batches stay single-step (splitting only adds step overhead).
    if b_pad >= 4 * 2048:
        tb = min(tb, max(2048, b_pad // 4))
    elif b_pad >= 2 * 1024:
        tb = min(tb, max(1024, b_pad // 2))
    tb = max(128, (tb // 128) * 128)
    # Re-balance tile size so padding never exceeds ~one lane-group per step.
    steps = -(-b_pad // tb)
    tb = _round_up(-(-b_pad // steps), 128)
    return tb, steps * tb


@jax.jit
def oleksii17_forward(x, params):
    """x: (B, num_pkts, num_fields) float32 -> (B, num_classes) float32."""
    b = x.shape[0]
    x2d = x.reshape(b, -1)                                # nn.Flatten
    ext_size = x2d.shape[1]

    w1, b1, w2, b2, w3, b3, wfc, bfc = params             # (out, in) / (out,)
    num_classes = wfc.shape[0]

    tb, b_pad = _choose_batch_tile(b, ext_size)
    grid = (b_pad // tb,)

    # Only wrapper-side work: zero-pad the batch axis (no-op when already
    # tile-aligned).  No transpose / dtype-cast pass in front of the kernel.
    x_p = jnp.pad(x2d, ((0, b_pad - b), (0, 0))) if b_pad != b else x2d

    weights = (w1, b1.reshape(-1, 1), w2, b2.reshape(-1, 1),
               w3, b3.reshape(-1, 1), wfc, bfc.reshape(-1, 1))
    weight_specs = [pl.BlockSpec(a.shape, lambda i: (0, 0)) for a in weights]

    flops = 2 * b_pad * (ext_size * 10 + 10 * 10 + 10 * 20 + 20 * num_classes)
    transcendentals = b_pad * (10 + 10 + 20)              # one exp per SELU elem
    bytes_accessed = (b_pad * ext_size * 4 + b_pad * num_classes * 4
                      + sum(int(a.size) * 4 for a in weights))

    out = pl.pallas_call(
        _fwd_kernel,
        out_shape=jax.ShapeDtypeStruct((b_pad, num_classes), jnp.float32),
        grid_spec=pl.GridSpec(
            grid=grid,
            in_specs=[pl.BlockSpec((tb, ext_size), lambda i: (i, 0))]
            + weight_specs,
            out_specs=pl.BlockSpec((tb, num_classes), lambda i: (i, 0)),
        ),
        compiler_params=pltpu.CompilerParams(
            dimension_semantics=("parallel",),            # dual-TC shard on v7x
        ),
        cost_estimate=pl.CostEstimate(
            flops=flops,
            transcendentals=transcendentals,
            bytes_accessed=bytes_accessed,
        ),
    )(x_p, *weights)

    return out[:b]                                        # slice only, no .T


def init_params(key, ext_size, inner_size=20, num_classes=10):
    """PyTorch nn.Linear-style init; weights stored (out_features, in_features)."""
    def linear(k, fan_in, fan_out):
        kw, kb = jax.random.split(k)
        bound = 1.0 / jnp.sqrt(jnp.float32(fan_in))
        w = jax.random.uniform(kw, (fan_out, fan_in), jnp.float32, -bound, bound)
        bvec = jax.random.uniform(kb, (fan_out,), jnp.float32, -bound, bound)
        return w, bvec

    k1, k2, k3, kfc = jax.random.split(key, 4)
    w1, b1 = linear(k1, ext_size, 10)
    w2, b2 = linear(k2, 10, 10)
    w3, b3 = linear(k3, 10, inner_size)
    wfc, bfc = linear(kfc, inner_size, num_classes)
    return (w1, b1, w2, b2, w3, b3, wfc, bfc)


if __name__ == "__main__":
    # Module-consistent small shapes: num_pkts=8, num_fields=4 -> ext_size=32.
    batch, num_pkts, num_fields, num_classes = 2, 8, 4, 10
    ext_size = num_pkts * num_fields

    key = jax.random.PRNGKey(0)
    kx, kp = jax.random.split(key)
    x = jax.random.normal(kx, (batch, num_pkts, num_fields), jnp.float32)
    params = init_params(kp, ext_size, inner_size=20, num_classes=num_classes)

    out = jax.block_until_ready(oleksii17_forward(x, params))

    # Pure-JAX f32 reference of the same forward pass.
    w1, b1, w2, b2, w3, b3, wfc, bfc = params
    h = x.reshape(batch, -1)
    h = _selu(h @ w1.T + b1)
    h = _selu(h @ w2.T + b2)
    h = _selu(h @ w3.T + b3)
    ref = jnp.maximum(h, 0.0) @ wfc.T + bfc

    assert out.shape == (batch, num_classes)
    max_diff = float(jnp.max(jnp.abs(out - ref)))
    assert jnp.allclose(out, ref, atol=2e-2, rtol=2e-2), max_diff
    print("KERNEL_OK")
</pallas_src>

<mosaic_0001>
module attributes {stable_mosaic.version = 11 : i64} {
  func.func @_fwd_kernel(%arg0: i32, %arg1: memref<128x32xf32, #tpu.memory_space<vmem>>, %arg2: memref<10x32xf32, #tpu.memory_space<vmem>>, %arg3: memref<10x1xf32, #tpu.memory_space<vmem>>, %arg4: memref<10x10xf32, #tpu.memory_space<vmem>>, %arg5: memref<10x1xf32, #tpu.memory_space<vmem>>, %arg6: memref<20x10xf32, #tpu.memory_space<vmem>>, %arg7: memref<20x1xf32, #tpu.memory_space<vmem>>, %arg8: memref<10x20xf32, #tpu.memory_space<vmem>>, %arg9: memref<10x1xf32, #tpu.memory_space<vmem>>, %arg10: memref<128x10xf32, #tpu.memory_space<vmem>>) attributes {dimension_semantics = [#tpu.dimension_semantics<parallel>], iteration_bounds = array<i64: 1>, scalar_prefetch = 0 : i64, scratch_operands = 0 : i64, tpu.core_type = #tpu.core_type<tc>, window_params = [{transform_indices = @transform_0, window_bounds = array<i64: 128, 32>}, {pipeline_mode = #tpu.pipeline_mode<synchronous>, transform_indices = @transform_1, window_bounds = array<i64: 10, 32>}, {pipeline_mode = #tpu.pipeline_mode<synchronous>, transform_indices = @transform_2, window_bounds = array<i64: 10, 1>}, {pipeline_mode = #tpu.pipeline_mode<synchronous>, transform_indices = @transform_3, window_bounds = array<i64: 10, 10>}, {pipeline_mode = #tpu.pipeline_mode<synchronous>, transform_indices = @transform_4, window_bounds = array<i64: 10, 1>}, {pipeline_mode = #tpu.pipeline_mode<synchronous>, transform_indices = @transform_5, window_bounds = array<i64: 20, 10>}, {pipeline_mode = #tpu.pipeline_mode<synchronous>, transform_indices = @transform_6, window_bounds = array<i64: 20, 1>}, {pipeline_mode = #tpu.pipeline_mode<synchronous>, transform_indices = @transform_7, window_bounds = array<i64: 10, 20>}, {pipeline_mode = #tpu.pipeline_mode<synchronous>, transform_indices = @transform_8, window_bounds = array<i64: 10, 1>}, {transform_indices = @transform_9, window_bounds = array<i64: 128, 10>}]} {
    %c0 = arith.constant 0 : index
    %c0_0 = arith.constant 0 : index
    %0 = vector.load %arg2[%c0, %c0_0] : memref<10x32xf32, #tpu.memory_space<vmem>>, vector<10x32xf32>
    %c0_1 = arith.constant 0 : index
    %c0_2 = arith.constant 0 : index
    %1 = vector.load %arg1[%c0_1, %c0_2] : memref<128x32xf32, #tpu.memory_space<vmem>>, vector<128x32xf32>
    %cst = arith.constant dense<0.000000e+00> : vector<10x128xf32>
    %2 = tpu.matmul %0, %1, %cst {dimension_numbers = #tpu.dot_dimension_numbers<[1], [1], [0], [0], [0, 0, 1, 0], [], []>} : vector<10x32xf32>, vector<128x32xf32>, vector<10x128xf32> -> vector<10x128xf32>
    %c0_3 = arith.constant 0 : index
    %c0_4 = arith.constant 0 : index
    %3 = vector.load %arg3[%c0_3, %c0_4] : memref<10x1xf32, #tpu.memory_space<vmem>>, vector<10x1xf32>
    %4 = vector.broadcast %3 : vector<10x1xf32> to vector<10x128xf32>
    %5 = arith.addf %2, %4 : vector<10x128xf32>
    %cst_5 = arith.constant 0.000000e+00 : f32
    %6 = vector.broadcast %cst_5 : f32 to vector<10x128xf32>
    %7 = arith.minimumf %5, %6 : vector<10x128xf32>
    %8 = math.exp %7 : vector<10x128xf32>
    %cst_6 = arith.constant 1.000000e+00 : f32
    %9 = vector.broadcast %cst_6 : f32 to vector<10x128xf32>
    %10 = arith.subf %8, %9 : vector<10x128xf32>
    %cst_7 = arith.constant 1.67326319 : f32
    %11 = vector.broadcast %cst_7 : f32 to vector<10x128xf32>
    %12 = arith.mulf %11, %10 : vector<10x128xf32>
    %cst_8 = arith.constant 0.000000e+00 : f32
    %13 = vector.broadcast %cst_8 : f32 to vector<10x128xf32>
    %14 = arith.cmpf ogt, %5, %13 : vector<10x128xf32>
    %15 = arith.select %14, %5, %12 : vector<10x128xi1>, vector<10x128xf32>
    %cst_9 = arith.constant 1.05070102 : f32
    %16 = vector.broadcast %cst_9 : f32 to vector<10x128xf32>
    %17 = arith.mulf %16, %15 : vector<10x128xf32>
    %c0_10 = arith.constant 0 : index
    %c0_11 = arith.constant 0 : index
    %18 = vector.load %arg4[%c0_10, %c0_11] : memref<10x10xf32, #tpu.memory_space<vmem>>, vector<10x10xf32>
    %cst_12 = arith.constant dense<0.000000e+00> : vector<10x128xf32>
    %19 = tpu.matmul %18, %17, %cst_12 {dimension_numbers = #tpu.dot_dimension_numbers<[1], [0], [0], [1], [0, 0, 1, 1], [], []>} : vector<10x10xf32>, vector<10x128xf32>, vector<10x128xf32> -> vector<10x128xf32>
    %c0_13 = arith.constant 0 : index
    %c0_14 = arith.constant 0 : index
    %20 = vector.load %arg5[%c0_13, %c0_14] : memref<10x1xf32, #tpu.memory_space<vmem>>, vector<10x1xf32>
    %21 = vector.broadcast %20 : vector<10x1xf32> to vector<10x128xf32>
    %22 = arith.addf %19, %21 : vector<10x128xf32>
    %cst_15 = arith.constant 0.000000e+00 : f32
    %23 = vector.broadcast %cst_15 : f32 to vector<10x128xf32>
    %24 = arith.minimumf %22, %23 : vector<10x128xf32>
    %25 = math.exp %24 : vector<10x128xf32>
    %cst_16 = arith.constant 1.000000e+00 : f32
    %26 = vector.broadcast %cst_16 : f32 to vector<10x128xf32>
    %27 = arith.subf %25, %26 : vector<10x128xf32>
    %cst_17 = arith.constant 1.67326319 : f32
    %28 = vector.broadcast %cst_17 : f32 to vector<10x128xf32>
    %29 = arith.mulf %28, %27 : vector<10x128xf32>
    %cst_18 = arith.constant 0.000000e+00 : f32
    %30 = vector.broadcast %cst_18 : f32 to vector<10x128xf32>
    %31 = arith.cmpf ogt, %22, %30 : vector<10x128xf32>
    %32 = arith.select %31, %22, %29 : vector<10x128xi1>, vector<10x128xf32>
    %cst_19 = arith.constant 1.05070102 : f32
    %33 = vector.broadcast %cst_19 : f32 to vector<10x128xf32>
    %34 = arith.mulf %33, %32 : vector<10x128xf32>
    %c0_20 = arith.constant 0 : index
    %c0_21 = arith.constant 0 : index
    %35 = vector.load %arg6[%c0_20, %c0_21] : memref<20x10xf32, #tpu.memory_space<vmem>>, vector<20x10xf32>
    %cst_22 = arith.constant dense<0.000000e+00> : vector<20x128xf32>
    %36 = tpu.matmul %35, %34, %cst_22 {dimension_numbers = #tpu.dot_dimension_numbers<[1], [0], [0], [1], [0, 0, 1, 1], [], []>} : vector<20x10xf32>, vector<10x128xf32>, vector<20x128xf32> -> vector<20x128xf32>
    %c0_23 = arith.constant 0 : index
    %c0_24 = arith.constant 0 : index
    %37 = vector.load %arg7[%c0_23, %c0_24] : memref<20x1xf32, #tpu.memory_space<vmem>>, vector<20x1xf32>
    %38 = vector.broadcast %37 : vector<20x1xf32> to vector<20x128xf32>
    %39 = arith.addf %36, %38 : vector<20x128xf32>
    %cst_25 = arith.constant 0.000000e+00 : f32
    %40 = vector.broadcast %cst_25 : f32 to vector<20x128xf32>
    %41 = arith.minimumf %39, %40 : vector<20x128xf32>
    %42 = math.exp %41 : vector<20x128xf32>
    %cst_26 = arith.constant 1.000000e+00 : f32
    %43 = vector.broadcast %cst_26 : f32 to vector<20x128xf32>
    %44 = arith.subf %42, %43 : vector<20x128xf32>
    %cst_27 = arith.constant 1.67326319 : f32
    %45 = vector.broadcast %cst_27 : f32 to vector<20x128xf32>
    %46 = arith.mulf %45, %44 : vector<20x128xf32>
    %cst_28 = arith.constant 0.000000e+00 : f32
    %47 = vector.broadcast %cst_28 : f32 to vector<20x128xf32>
    %48 = arith.cmpf ogt, %39, %47 : vector<20x128xf32>
    %49 = arith.select %48, %39, %46 : vector<20x128xi1>, vector<20x128xf32>
    %cst_29 = arith.constant 1.05070102 : f32
    %50 = vector.broadcast %cst_29 : f32 to vector<20x128xf32>
    %51 = arith.mulf %50, %49 : vector<20x128xf32>
    %cst_30 = arith.constant 0.000000e+00 : f32
    %52 = vector.broadcast %cst_30 : f32 to vector<20x128xf32>
    %53 = arith.maximumf %51, %52 : vector<20x128xf32>
    %c0_31 = arith.constant 0 : index
    %c0_32 = arith.constant 0 : index
    %54 = vector.load %arg8[%c0_31, %c0_32] : memref<10x20xf32, #tpu.memory_space<vmem>>, vector<10x20xf32>
    %cst_33 = arith.constant dense<0.000000e+00> : vector<10x128xf32>
    %55 = tpu.matmul %54, %53, %cst_33 {dimension_numbers = #tpu.dot_dimension_numbers<[1], [0], [0], [1], [0, 0, 1, 1], [], []>} : vector<10x20xf32>, vector<20x128xf32>, vector<10x128xf32> -> vector<10x128xf32>
    %c0_34 = arith.constant 0 : index
    %c0_35 = arith.constant 0 : index
    %56 = vector.load %arg9[%c0_34, %c0_35] : memref<10x1xf32, #tpu.memory_space<vmem>>, vector<10x1xf32>
    %57 = vector.broadcast %56 : vector<10x1xf32> to vector<10x128xf32>
    %58 = arith.addf %55, %57 : vector<10x128xf32>
    %59 = tpu.transpose %58, [1, 0] : vector<10x128xf32> -> vector<128x10xf32>
    %c0_36 = arith.constant 0 : index
    %c0_37 = arith.constant 0 : index
    %60 = vector.load %arg10[%c0_36, %c0_37] : memref<128x10xf32, #tpu.memory_space<vmem>>, vector<128x10xf32>
    tpu.vector_store %arg10[%c0_36, %c0_37], %59 {strides = array<i32>} : memref<128x10xf32, #tpu.memory_space<vmem>>, vector<128x10xf32>,
    return
  }
  func.func @transform_0(%arg0: i32) -> (i32, i32) {
    %c0_i32 = arith.constant 0 : i32
    %c0_i32_0 = arith.constant 0 : i32
    return %arg0, %c0_i32 : i32, i32
  }
  func.func @transform_1(%arg0: i32) -> (i32, i32) {
    %c0_i32 = arith.constant 0 : i32
    %c0_i32_0 = arith.constant 0 : i32
    %c0_i32_1 = arith.constant 0 : i32
    return %c0_i32, %c0_i32_0 : i32, i32
  }
  func.func @transform_2(%arg0: i32) -> (i32, i32) {
    %c0_i32 = arith.constant 0 : i32
    %c0_i32_0 = arith.constant 0 : i32
    %c0_i32_1 = arith.constant 0 : i32
    return %c0_i32, %c0_i32_0 : i32, i32
  }
  func.func @transform_3(%arg0: i32) -> (i32, i32) {
    %c0_i32 = arith.constant 0 : i32
    %c0_i32_0 = arith.constant 0 : i32
    %c0_i32_1 = arith.constant 0 : i32
    return %c0_i32, %c0_i32_0 : i32, i32
  }
  func.func @transform_4(%arg0: i32) -> (i32, i32) {
    %c0_i32 = arith.constant 0 : i32
    %c0_i32_0 = arith.constant 0 : i32
    %c0_i32_1 = arith.constant 0 : i32
    return %c0_i32, %c0_i32_0 : i32, i32
  }
  func.func @transform_5(%arg0: i32) -> (i32, i32) {
    %c0_i32 = arith.constant 0 : i32
    %c0_i32_0 = arith.constant 0 : i32
    %c0_i32_1 = arith.constant 0 : i32
    return %c0_i32, %c0_i32_0 : i32, i32
  }
  func.func @transform_6(%arg0: i32) -> (i32, i32) {
    %c0_i32 = arith.constant 0 : i32
    %c0_i32_0 = arith.constant 0 : i32
    %c0_i32_1 = arith.constant 0 : i32
    return %c0_i32, %c0_i32_0 : i32, i32
  }
  func.func @transform_7(%arg0: i32) -> (i32, i32) {
    %c0_i32 = arith.constant 0 : i32
    %c0_i32_0 = arith.constant 0 : i32
    %c0_i32_1 = arith.constant 0 : i32
    return %c0_i32, %c0_i32_0 : i32, i32
  }
  func.func @transform_8(%arg0: i32) -> (i32, i32) {
    %c0_i32 = arith.constant 0 : i32
    %c0_i32_0 = arith.constant 0 : i32
    %c0_i32_1 = arith.constant 0 : i32
    return %c0_i32, %c0_i32_0 : i32, i32
  }
  func.func @transform_9(%arg0: i32) -> (i32, i32) {
    %c0_i32 = arith.constant 0 : i32
    %c0_i32_0 = arith.constant 0 : i32
    return %arg0, %c0_i32 : i32, i32
  }
}

</mosaic_0001>

<llo_original>
// kernel: oleksii17_forward.1
$region0: #{oleksii17_forward.1}
  #allocation0 [shape = 'u32[]', space=smem, size = 0x4, offset = 0x4, fixed_abs, tag = 'smem constant byte address 0x4 - core index']
  #allocation1 [shape = 'u32[72,128]{1,0:T(1,128)}', space=vmem, size = 0x9000, scoped, tag = 'internal scratch']
  %s0 = inlined_call_operand.vmem [shape: f32[128,32], index: 0, kind: input, shape index: {}]
  %s1 = inlined_call_operand.vmem [shape: f32[10,32], index: 1, kind: input, shape index: {}]
  %s2 = inlined_call_operand.vmem [shape: f32[10,1], index: 2, kind: input, shape index: {}]
  %s3 = inlined_call_operand.vmem [shape: f32[10,10], index: 3, kind: input, shape index: {}]
  %s4 = inlined_call_operand.vmem [shape: f32[10,1], index: 4, kind: input, shape index: {}]
  %s5 = inlined_call_operand.vmem [shape: f32[20,10], index: 5, kind: input, shape index: {}]
  %s6 = inlined_call_operand.vmem [shape: f32[20,1], index: 6, kind: input, shape index: {}]
  %s7 = inlined_call_operand.vmem [shape: f32[10,20], index: 7, kind: input, shape index: {}]
  %s8 = inlined_call_operand.vmem [shape: f32[10,1], index: 8, kind: input, shape index: {}]
  %s9 = inlined_call_operand.vmem [shape: f32[128,10], index: 9, kind: output, shape index: {}]
  %s10 = sld [smem:[#allocation0]]
  $region46: #{oleksii17_forward.1} parent=0
    _
  %s12 = ssub.s32 1, %s10
  %s13 = scalar_select 0, %s12, %s10
  // Predicated region
  $region2: #{oleksii17_forward.1} parent=0 // pred_check
    _
  $region3: #{oleksii17_forward.1} parent=0 // pred_check_branch
    %15 = sbr.rel (0) target = $region5
  $region4: #{oleksii17_forward.1} parent=0 // pred_region
    _
  $region5: #{oleksii17_forward.1} parent=0 // pred_fallthru
    _
  // Predicated region
  $region6: #{oleksii17_forward.1} parent=0 // pred_check
    _
  $region7: #{oleksii17_forward.1} parent=0 // pred_check_branch
    %17 = sbr.rel (0) target = $region9
  $region8: #{oleksii17_forward.1} parent=0 // pred_region
    _
  $region9: #{oleksii17_forward.1} parent=0 // pred_fallthru
    _
  // Predicated region
  $region10: #{oleksii17_forward.1} parent=0 // pred_check
    _
  $region11: #{oleksii17_forward.1} parent=0 // pred_check_branch
    %19 = sbr.rel (0) target = $region13
  $region12: #{oleksii17_forward.1} parent=0 // pred_region
    _
  $region13: #{oleksii17_forward.1} parent=0 // pred_fallthru
    _
  // Predicated region
  $region14: #{oleksii17_forward.1} parent=0 // pred_check
    _
  $region15: #{oleksii17_forward.1} parent=0 // pred_check_branch
    %21 = sbr.rel (0) target = $region17
  $region16: #{oleksii17_forward.1} parent=0 // pred_region
    _
  $region17: #{oleksii17_forward.1} parent=0 // pred_fallthru
    _
  // Predicated region
  $region18: #{oleksii17_forward.1} parent=0 // pred_check
    _
  $region19: #{oleksii17_forward.1} parent=0 // pred_check_branch
    %23 = sbr.rel (0) target = $region21
  $region20: #{oleksii17_forward.1} parent=0 // pred_region
    _
  $region21: #{oleksii17_forward.1} parent=0 // pred_fallthru
    _
  // Predicated region
  $region22: #{oleksii17_forward.1} parent=0 // pred_check
    _
  $region23: #{oleksii17_forward.1} parent=0 // pred_check_branch
    %25 = sbr.rel (0) target = $region25
  $region24: #{oleksii17_forward.1} parent=0 // pred_region
    _
  $region25: #{oleksii17_forward.1} parent=0 // pred_fallthru
    _
  // Predicated region
  $region26: #{oleksii17_forward.1} parent=0 // pred_check
    _
  $region27: #{oleksii17_forward.1} parent=0 // pred_check_branch
    %27 = sbr.rel (0) target = $region29
  $region28: #{oleksii17_forward.1} parent=0 // pred_region
    _
  $region29: #{oleksii17_forward.1} parent=0 // pred_fallthru
    _
  // Predicated region
  $region30: #{oleksii17_forward.1} parent=0 // pred_check
    _
  $region31: #{oleksii17_forward.1} parent=0 // pred_check_branch
    %29 = sbr.rel (0) target = $region33
  $region32: #{oleksii17_forward.1} parent=0 // pred_region
    _
  $region33: #{oleksii17_forward.1} parent=0 // pred_fallthru
    _
  // Predicated region
  $region34: #{oleksii17_forward.1} parent=0 // pred_check
    _
  $region35: #{oleksii17_forward.1} parent=0 // pred_check_branch
    %31 = sbr.rel (0) target = $region37
  $region36: #{oleksii17_forward.1} parent=0 // pred_region
    _
  $region37: #{oleksii17_forward.1} parent=0 // pred_fallthru
    _
  %v32 = vld [vmem:[%s1] sm:$0xff]
  %v33 = vld [vmem:[%s1 + $0x8] sm:$0x3]
  %v34 = vld [vmem:[%s0] sm:$0xff]
  %v35 = vld [vmem:[%s0 + $0x8] sm:$0xff]
  %v36 = vld [vmem:[%s0 + $0x10] sm:$0xff]
  %v37 = vld [vmem:[%s0 + $0x18] sm:$0xff]
  %v38 = vld [vmem:[%s0 + $0x20] sm:$0xff]
  %v39 = vld [vmem:[%s0 + $0x28] sm:$0xff]
  %v40 = vld [vmem:[%s0 + $0x30] sm:$0xff]
  %v41 = vld [vmem:[%s0 + $0x38] sm:$0xff]
  %v42 = vld [vmem:[%s0 + $0x40] sm:$0xff]
  %v43 = vld [vmem:[%s0 + $0x48] sm:$0xff]
  %v44 = vld [vmem:[%s0 + $0x50] sm:$0xff]
  %v45 = vld [vmem:[%s0 + $0x58] sm:$0xff]
  %v46 = vld [vmem:[%s0 + $0x60] sm:$0xff]
  %v47 = vld [vmem:[%s0 + $0x68] sm:$0xff]
  %v48 = vld [vmem:[%s0 + $0x70] sm:$0xff]
  %v49 = vld [vmem:[%s0 + $0x78] sm:$0xff]
  %v50 = vld [vmem:[%s2] sm:$0xff]
  %v51 = vld [vmem:[%s2 + $0x8] sm:$0x3]
  %53 = vset.pattern.permute.xlu0 0
  %54 = vperm.xlu0 %53, %v50
  %v55 = vpop.permute.xlu0 %54
  %58 = vset.pattern.permute.xlu0 0
  %59 = vperm.xlu0 %58, %v51
  %v60 = vpop.permute.xlu0 %59
  %vm62 = vcmask 261120
  %v64 = vsel %vm62, %v32, 0
  %v67 = vsel %vm62, %v33, 0
  %v70 = vsel %vm62, %v34, 0
  %v73 = vsel %vm62, %v35, 0
  %v76 = vsel %vm62, %v36, 0
  %v79 = vsel %vm62, %v37, 0
  %v82 = vsel %vm62, %v38, 0
  %v85 = vsel %vm62, %v39, 0
  %v88 = vsel %vm62, %v40, 0
  %v91 = vsel %vm62, %v41, 0
  %v94 = vsel %vm62, %v42, 0
  %v97 = vsel %vm62, %v43, 0
  %v100 = vsel %vm62, %v44, 0
  %v103 = vsel %vm62, %v45, 0
  %v106 = vsel %vm62, %v46, 0
  %v109 = vsel %vm62, %v47, 0
  %v112 = vsel %vm62, %v48, 0
  %v115 = vsel %vm62, %v49, 0
  %117 = vmatpush.xpose.msra.mxu0 %v115
  %118 = vmatpush.xpose.msra.mxu0 %v112
  %119 = vmatpush.xpose.msra.mxu0 %v109
  %120 = vmatpush.xpose.msra.mxu0 %v106
  %121 = vmatpush.xpose.msra.mxu0 %v103
  %122 = vmatpush.xpose.msra.mxu0 %v100
  %123 = vmatpush.xpose.msra.mxu0 %v97
  %124 = vmatpush.xpose.msra.mxu0 %v94
  %125 = vmatpush.xpose.msra.mxu0 %v91
  %126 = vmatpush.xpose.msra.mxu0 %v88
  %127 = vmatpush.xpose.msra.mxu0 %v85
  %128 = vmatpush.xpose.msra.mxu0 %v82
  %129 = vmatpush.xpose.msra.mxu0 %v79
  %130 = vmatpush.xpose.msra.mxu0 %v76
  %131 = vmatpush.xpose.msra.mxu0 %v73
  %132 = vmatpush.xpose.msra.mxu0 %v70
  %133 = vmatmul.f32.gmra.mxu0 %v64
  %v134 = vpop.f32.mrf.mxu0
  %v135 = vadd.f32 %v55, %v134
  %136 = vmatmul.f32.gmra.mxu0 %v67
  %v137 = vpop.f32.mrf.mxu0
  %v138 = vadd.f32 %v60, %v137
  %139 = vdwg.mxu0
  %v140 = vmin.f32 %v135, 0.0
  %v141 = vmin.f32 %v138, 0.0
  %v142 = vmul.f32 %v140, 1.442695
  %v143 = vpow.pop %v142
  %v144 = vmul.f32 %v141, 1.442695
  %v145 = vpow.pop %v144
  %v146 = vsub.f32 %v143, 1.0
  %v147 = vsub.f32 %v145, 1.0
  %v148 = vmul.f32 %v146, 1.6732632
  %v149 = vmul.f32 %v147, 1.6732632
  %vm150 = vcmp.gt.f32.partialorder %v135, 0.0
  %vm151 = vcmp.gt.f32.partialorder %v138, 0.0
  %v152 = vsel %vm150, %v135, %v148
  %v153 = vsel %vm151, %v138, %v149
  %v154 = vmul.f32 %v152, 1.050701
  %v155 = vmul.f32 %v153, 1.050701
  %v156 = vld [vmem:[%s3] sm:$0xff]
  %v157 = vld [vmem:[%s3 + $0x8] sm:$0x3]
  %v158 = vld [vmem:[%s4] sm:$0xff]
  %v159 = vld [vmem:[%s4 + $0x8] sm:$0x3]
  %161 = vset.pattern.permute.xlu0 0
  %162 = vperm.xlu0 %161, %v158
  %v163 = vpop.permute.xlu0 %162
  %166 = vset.pattern.permute.xlu0 0
  %167 = vperm.xlu0 %166, %v159
  %v168 = vpop.permute.xlu0 %167
  %vm170 = vcmask 80896
  %v172 = vsel %vm170, %v156, 0
  %v175 = vsel %vm170, %v157, 0
  %vm177 = vcmask 1041408
  %v179 = vsel %vm177, %v155, 0
  %181 = vmatpush.msra.mxu0 0.0
  %182 = vmatpush.msra.mxu0 0.0
  %183 = vmatpush.msra.mxu0 0.0
  %184 = vmatpush.msra.mxu0 0.0
  %185 = vmatpush.msra.mxu0 0.0
  %186 = vmatpush.msra.mxu0 0.0
  %187 = vmatpush.msra.mxu0 0.0
  %188 = vmatpush.msra.mxu0 0.0
  %189 = vmatpush.msra.mxu0 0.0
  %190 = vmatpush.msra.mxu0 0.0
  %191 = vmatpush.msra.mxu0 0.0
  %192 = vmatpush.msra.mxu0 0.0
  %193 = vmatpush.msra.mxu0 0.0
  %194 = vmatpush.msra.mxu0 0.0
  %195 = vmatpush.msra.mxu0 %v179
  %196 = vmatpush.msra.mxu0 %v154
  %197 = vmatmul.f32.gmra.mxu0 %v172
  %v198 = vpop.f32.mrf.mxu0
  %v199 = vadd.f32 %v163, %v198
  %200 = vmatmul.f32.gmra.mxu0 %v175
  %v201 = vpop.f32.mrf.mxu0
  %v202 = vadd.f32 %v168, %v201
  %203 = vdwg.mxu0
  %v204 = vmin.f32 %v199, 0.0
  %v205 = vmin.f32 %v202, 0.0
  %v206 = vmul.f32 %v204, 1.442695
  %v207 = vpow.pop %v206
  %v208 = vmul.f32 %v205, 1.442695
  %v209 = vpow.pop %v208
  %v210 = vsub.f32 %v207, 1.0
  %v211 = vsub.f32 %v209, 1.0
  %v212 = vmul.f32 %v210, 1.6732632
  %v213 = vmul.f32 %v211, 1.6732632
  %vm214 = vcmp.gt.f32.partialorder %v199, 0.0
  %vm215 = vcmp.gt.f32.partialorder %v202, 0.0
  %v216 = vsel %vm214, %v199, %v212
  %v217 = vsel %vm215, %v202, %v213
  %v218 = vmul.f32 %v216, 1.050701
  %v219 = vmul.f32 %v217, 1.050701
  %v220 = vld [vmem:[%s5] sm:$0xff]
  %v221 = vld [vmem:[%s5 + $0x8] sm:$0xff]
  %v222 = vld [vmem:[%s5 + $0x10] sm:$0xf]
  %v223 = vld [vmem:[%s6] sm:$0xff]
  %v224 = vld [vmem:[%s6 + $0x8] sm:$0xff]
  %v225 = vld [vmem:[%s6 + $0x10] sm:$0xf]
  %227 = vset.pattern.permute.xlu0 0
  %228 = vperm.xlu0 %227, %v223
  %v229 = vpop.permute.xlu0 %228
  %232 = vset.pattern.permute.xlu0 0
  %233 = vperm.xlu0 %232, %v224
  %v234 = vpop.permute.xlu0 %233
  %237 = vset.pattern.permute.xlu0 0
  %238 = vperm.xlu0 %237, %v225
  %v239 = vpop.permute.xlu0 %238
  %v242 = vsel %vm170, %v220, 0
  %v245 = vsel %vm170, %v221, 0
  %v248 = vsel %vm170, %v222, 0
  %v251 = vsel %vm177, %v219, 0
  %253 = vmatpush.msra.mxu0 0.0
  %254 = vmatpush.msra.mxu0 0.0
  %255 = vmatpush.msra.mxu0 0.0
  %256 = vmatpush.msra.mxu0 0.0
  %257 = vmatpush.msra.mxu0 0.0
  %258 = vmatpush.msra.mxu0 0.0
  %259 = vmatpush.msra.mxu0 0.0
  %260 = vmatpush.msra.mxu0 0.0
  %261 = vmatpush.msra.mxu0 0.0
  %262 = vmatpush.msra.mxu0 0.0
  %263 = vmatpush.msra.mxu0 0.0
  %264 = vmatpush.msra.mxu0 0.0
  %265 = vmatpush.msra.mxu0 0.0
  %266 = vmatpush.msra.mxu0 0.0
  %267 = vmatpush.msra.mxu0 %v251
  %268 = vmatpush.msra.mxu0 %v218
  %269 = vmatmul.f32.gmra.mxu0 %v242
  %v270 = vpop.f32.mrf.mxu0
  %v271 = vadd.f32 %v229, %v270
  %272 = vmatmul.f32.gmra.mxu0 %v245
  %v273 = vpop.f32.mrf.mxu0
  %v274 = vadd.f32 %v234, %v273
  %275 = vmatmul.f32.gmra.mxu0 %v248
  %v276 = vpop.f32.mrf.mxu0
  %v277 = vadd.f32 %v239, %v276
  %278 = vdwg.mxu0
  %v279 = vmin.f32 %v271, 0.0
  %v280 = vmin.f32 %v274, 0.0
  %v281 = vmin.f32 %v277, 0.0
  %v282 = vmul.f32 %v279, 1.442695
  %v283 = vpow.pop %v282
  %v284 = vmul.f32 %v280, 1.442695
  %v285 = vpow.pop %v284
  %v286 = vmul.f32 %v281, 1.442695
  %v287 = vpow.pop %v286
  %v288 = vsub.f32 %v283, 1.0
  %v289 = vsub.f32 %v285, 1.0
  %v290 = vsub.f32 %v287, 1.0
  %v291 = vmul.f32 %v288, 1.6732632
  %v292 = vmul.f32 %v289, 1.6732632
  %v293 = vmul.f32 %v290, 1.6732632
  %vm294 = vcmp.gt.f32.partialorder %v271, 0.0
  %vm295 = vcmp.gt.f32.partialorder %v274, 0.0
  %vm296 = vcmp.gt.f32.partialorder %v277, 0.0
  %v297 = vsel %vm294, %v271, %v291
  %v298 = vsel %vm295, %v274, %v292
  %v299 = vsel %vm296, %v277, %v293
  %v300 = vmul.f32 %v297, 1.050701
  %v301 = vmul.f32 %v298, 1.050701
  %v302 = vmul.f32 %v299, 1.050701
  %v303 = vmax.f32 %v300, 0.0
  %v304 = vmax.f32 %v301, 0.0
  %v305 = vmax.f32 %v302, 0.0
  %v306 = vld [vmem:[%s7] sm:$0xff]
  %v307 = vld [vmem:[%s7 + $0x8] sm:$0x3]
  %v308 = vld [vmem:[%s8] sm:$0xff]
  %v309 = vld [vmem:[%s8 + $0x8] sm:$0x3]
  %311 = vset.pattern.permute.xlu0 0
  %312 = vperm.xlu0 %311, %v308
  %v313 = vpop.permute.xlu0 %312
  %316 = vset.pattern.permute.xlu0 0
  %317 = vperm.xlu0 %316, %v309
  %v318 = vpop.permute.xlu0 %317
  %vm320 = vcmask 162816
  %v322 = vsel %vm320, %v306, 0
  %v325 = vsel %vm320, %v307, 0
  %vm327 = vcmask 1043456
  %v329 = vsel %vm327, %v305, 0
  %331 = vmatpush.msra.mxu0 0.0
  %332 = vmatpush.msra.mxu0 0.0
  %333 = vmatpush.msra.mxu0 0.0
  %334 = vmatpush.msra.mxu0 0.0
  %335 = vmatpush.msra.mxu0 0.0
  %336 = vmatpush.msra.mxu0 0.0
  %337 = vmatpush.msra.mxu0 0.0
  %338 = vmatpush.msra.mxu0 0.0
  %339 = vmatpush.msra.mxu0 0.0
  %340 = vmatpush.msra.mxu0 0.0
  %341 = vmatpush.msra.mxu0 0.0
  %342 = vmatpush.msra.mxu0 0.0
  %343 = vmatpush.msra.mxu0 0.0
  %344 = vmatpush.msra.mxu0 %v329
  %345 = vmatpush.msra.mxu0 %v304
  %346 = vmatpush.msra.mxu0 %v303
  %347 = vmatmul.f32.gmra.mxu0 %v322
  %v348 = vpop.f32.mrf.mxu0
  %v349 = vadd.f32 %v313, %v348
  %350 = vmatmul.f32.gmra.mxu0 %v325
  %v351 = vpop.f32.mrf.mxu0
  %v352 = vadd.f32 %v318, %v351
  %353 = vdwg.mxu0
  %354 = vxpose.xlu0.b32.start [1/16] %v349, 128
  %355 = vxpose.xlu0.b32.cont [2/16] %v352, 128
  %356 = vxpose.xlu0.b32.cont [3/16] 0.0, 128
  %357 = vxpose.xlu0.b32.cont [4/16] 0.0, 128
  %358 = vxpose.xlu0.b32.cont [5/16] 0.0, 128
  %359 = vxpose.xlu0.b32.cont [6/16] 0.0, 128
  %360 = vxpose.xlu0.b32.cont [7/16] 0.0, 128
  %361 = vxpose.xlu0.b32.cont [8/16] 0.0, 128
  %362 = vxpose.xlu0.b32.cont [9/16] 0.0, 128
  %363 = vxpose.xlu0.b32.cont [10/16] 0.0, 128
  %364 = vxpose.xlu0.b32.cont [11/16] 0.0, 128
  %365 = vxpose.xlu0.b32.cont [12/16] 0.0, 128
  %366 = vxpose.xlu0.b32.cont [13/16] 0.0, 128
  %367 = vxpose.xlu0.b32.cont [14/16] 0.0, 128
  %368 = vxpose.xlu0.b32.cont [15/16] 0.0, 128
  %369 = vxpose.xlu0.b32.end [16/16] 0.0, 128
  %v370 = vpop.trf.xlu0
  %v371 = vpop.trf.xlu0
  %v372 = vpop.trf.xlu0
  %v373 = vpop.trf.xlu0
  %v374 = vpop.trf.xlu0
  %v375 = vpop.trf.xlu0
  %v376 = vpop.trf.xlu0
  %v377 = vpop.trf.xlu0
  %v378 = vpop.trf.xlu0
  %v379 = vpop.trf.xlu0
  %v380 = vpop.trf.xlu0
  %v381 = vpop.trf.xlu0
  %v382 = vpop.trf.xlu0
  %v383 = vpop.trf.xlu0
  %v384 = vpop.trf.xlu0
  %v385 = vpop.trf.xlu0
  %386 = vst.msk [vmem:[%s9] sm:$0xff] %vm170, %v370
  %387 = vst.msk [vmem:[%s9 + $0x8] sm:$0xff] %vm170, %v371
  %388 = vst.msk [vmem:[%s9 + $0x10] sm:$0xff] %vm170, %v372
  %389 = vst.msk [vmem:[%s9 + $0x18] sm:$0xff] %vm170, %v373
  %390 = vst.msk [vmem:[%s9 + $0x20] sm:$0xff] %vm170, %v374
  %391 = vst.msk [vmem:[%s9 + $0x28] sm:$0xff] %vm170, %v375
  %392 = vst.msk [vmem:[%s9 + $0x30] sm:$0xff] %vm170, %v376
  %393 = vst.msk [vmem:[%s9 + $0x38] sm:$0xff] %vm170, %v377
  %394 = vst.msk [vmem:[%s9 + $0x40] sm:$0xff] %vm170, %v378
  %395 = vst.msk [vmem:[%s9 + $0x48] sm:$0xff] %vm170, %v379
  %396 = vst.msk [vmem:[%s9 + $0x50] sm:$0xff] %vm170, %v380
  %397 = vst.msk [vmem:[%s9 + $0x58] sm:$0xff] %vm170, %v381
  %398 = vst.msk [vmem:[%s9 + $0x60] sm:$0xff] %vm170, %v382
  %399 = vst.msk [vmem:[%s9 + $0x68] sm:$0xff] %vm170, %v383
  %400 = vst.msk [vmem:[%s9 + $0x70] sm:$0xff] %vm170, %v384
  %401 = vst.msk [vmem:[%s9 + $0x78] sm:$0xff] %vm170, %v385
  // Predicated region
  $region38: #{oleksii17_forward.1} parent=0 // pred_check
    _
  $region39: #{oleksii17_forward.1} parent=0 // pred_check_branch
    %403 = sbr.rel (0) target = $region41
  $region40: #{oleksii17_forward.1} parent=0 // pred_region
    _
  $region41: #{oleksii17_forward.1} parent=0 // pred_fallthru
    _
  // Predicated region
  $region42: #{oleksii17_forward.1} parent=0 // pred_check
    _
  $region43: #{oleksii17_forward.1} parent=0 // pred_check_branch
    %405 = sbr.rel (0) target = $region45
  $region44: #{oleksii17_forward.1} parent=0 // pred_region
    _
  $region45: #{oleksii17_forward.1} parent=0 // pred_fallthru
    _

</llo_original>
